<compile_context>
chip_gen: v6e
topology: v6e:2x2x1
jax: 0.10.0
libtpu: 0.0.40
codegen_flags: <defaults>
</compile_context>

<pallas_src>
import jax
import jax.numpy as jnp
from jax.experimental import pallas as pl
from jax.experimental.pallas import tpu as pltpu


def _make_rpn_head_kernel(C, H, W, A):
    HW = H * W
    PAD = 2 * W  # 2 zero rows front/back keep every tap offset non-negative (VMEM only)

    def kernel(x_ref, mask_ref, wconv_ref, bconv_ref, wh_ref, bh_ref,
               obj_ref, box_ref, xpad_ref):
        # x_ref:     (1, C, HW)       f32  raw feature, spatial flattened (no XLA pre-pass)
        # mask_ref:  (2, HW)          f32  row0: 0 where x==0 ; row1: 0 where x==W-1
        # wconv_ref: (9, C, C)        bf16 3x3 conv weights, tap-major (ky*3+kx, C_out, C_in)
        # bconv_ref: (C, 1)           f32  conv bias
        # wh_ref:    (5A, C)          bf16 fused 1x1 heads: rows [0,A)=cls, [A,5A)=bbox
        # bh_ref:    (5A, 1)          f32  fused 1x1 biases
        # obj_ref:   (1, A, HW)       f32  sigmoid(cls logits)   (lane-dense)
        # box_ref:   (1, 4A, HW)      f32  bbox regression       (lane-dense)
        # xpad_ref:  (C, HW + 4W)     bf16 VMEM scratch: halo-padded, bf16 copy of the input

        # Build the halo-padded bf16 image in VMEM (cast fused; padding never touches HBM).
        halo = jnp.zeros((C, PAD), jnp.bfloat16)
        xpad_ref[:, pl.ds(0, PAD)] = halo
        xpad_ref[:, pl.ds(PAD + HW, PAD)] = halo
        xpad_ref[:, pl.ds(PAD, HW)] = x_ref[0].astype(jnp.bfloat16)

        left_m = mask_ref[0:1, :]    # (1, HW) f32
        right_m = mask_ref[1:2, :]   # (1, HW) f32

        # 3x3 conv, padding=1, stride=1: 9 contiguous-window bf16 matmuls with the f32 sum
        # held in a local value (no per-tap VMEM accumulator read-modify-write).
        acc = None
        for tap in range(9):
            ky, kx = tap // 3, tap % 3
            off = (ky + 1) * W + (kx - 1)           # static offset into padded flat image
            win = xpad_ref[:, pl.ds(off, HW)]       # (C, HW) bf16, contiguous lane slice
            contrib = jnp.dot(wconv_ref[tap], win, preferred_element_type=jnp.float32)
            # Kill horizontal wrap-around post-dot in f32 (identical math: mask is per-lane,
            # the dot only contracts channels).
            if kx == 0:
                contrib = contrib * left_m
            elif kx == 2:
                contrib = contrib * right_m
            acc = contrib if acc is None else acc + contrib

        # conv bias + ReLU in f32
        t = jnp.maximum(acc + bconv_ref[...], 0.0)

        # fused 1x1 cls+bbox heads: one bf16 matmul, f32 accumulation
        heads = jnp.dot(wh_ref[...], t.astype(jnp.bfloat16),
                        preferred_element_type=jnp.float32) + bh_ref[...]

        # Epilogue: sigmoid on the cls rows fused in-kernel (EUP is idle), lane-dense stores.
        cls_logits = heads[:A, :]
        obj_ref[0] = 1.0 / (1.0 + jnp.exp(-cls_logits))
        box_ref[0] = heads[A:, :]

    return kernel


def rpn_head(feature_nchw, params):
    """feature_nchw: (N, C, H, W) float32.

    Returns (objectness, bbox_reg) in NCHW layout; objectness already has sigmoid applied
    (fused into the kernel epilogue).
    """
    N, C, H, W = feature_nchw.shape
    A = params["w_cls"].shape[0]
    HW = H * W

    # Free contiguous collapse of spatial dims; the f32 feature goes straight into the kernel.
    x = feature_nchw.reshape(N, C, HW)

    # Tiny resident per-lane border masks (computed once outside the grid loop).
    xs = jnp.arange(HW, dtype=jnp.int32) % W
    masks = jnp.stack([(xs != 0).astype(jnp.float32),
                       (xs != W - 1).astype(jnp.float32)], axis=0)       # (2, HW)

    w_conv = params["w_conv"].astype(jnp.bfloat16)                                   # (9, C, C)
    b_conv = params["b_conv"]                                                        # (C, 1)
    w_heads = jnp.concatenate([params["w_cls"], params["w_box"]], axis=0).astype(jnp.bfloat16)  # (5A, C)
    b_heads = jnp.concatenate([params["b_cls"], params["b_box"]], axis=0)            # (5A, 1)

    obj, box = pl.pallas_call(
        _make_rpn_head_kernel(C, H, W, A),
        out_shape=(jax.ShapeDtypeStruct((N, A, HW), jnp.float32),
                   jax.ShapeDtypeStruct((N, 4 * A, HW), jnp.float32)),
        grid=(N,),
        in_specs=[
            pl.BlockSpec((1, C, HW), lambda n: (n, 0, 0)),       # raw f32 feature block
            pl.BlockSpec((2, HW), lambda n: (0, 0)),             # border masks (resident)
            pl.BlockSpec((9, C, C), lambda n: (0, 0, 0)),        # conv weights (resident)
            pl.BlockSpec((C, 1), lambda n: (0, 0)),              # conv bias
            pl.BlockSpec((5 * A, C), lambda n: (0, 0)),          # fused head weights
            pl.BlockSpec((5 * A, 1), lambda n: (0, 0)),          # fused head biases
        ],
        out_specs=(pl.BlockSpec((1, A, HW), lambda n: (n, 0, 0)),
                   pl.BlockSpec((1, 4 * A, HW), lambda n: (n, 0, 0))),
        scratch_shapes=[pltpu.VMEM((C, HW + 4 * W), jnp.bfloat16)],   # halo-padded bf16 image
        compiler_params=pltpu.CompilerParams(dimension_semantics=("parallel",)),
    )(x, masks, w_conv, b_conv, w_heads, b_heads)

    objectness = obj.reshape(N, A, H, W)
    bbox_reg = box.reshape(N, 4 * A, H, W)
    return objectness, bbox_reg


def rpn_forward(feature_nchw, params):
    """Mirror of RPN.forward tensor math: head -> sigmoid (fused in-kernel) -> rearranges."""
    objectness_map, bbox_reg = rpn_head(feature_nchw, params)
    N, A, H, W = objectness_map.shape
    # 'b c h w -> b (h w c)'
    objectness = jnp.transpose(objectness_map, (0, 2, 3, 1)).reshape(N, H * W * A)
    # 'b (n c) h w -> b (h w n) c', c=4
    bbox = bbox_reg.reshape(N, A, 4, H, W)
    bbox = jnp.transpose(bbox, (0, 3, 4, 1, 2)).reshape(N, H * W * A, 4)
    # TODO(synk): anchor generation, box decode/clip, proposal filtering (top-k/NMS) and the
    # sampled RPN loss are data-dependent host-style logic with no clean Pallas equivalent.
    return objectness, bbox


def _reference_rpn_head(feature_nchw, params):
    """Pure-JAX reference with operands quantized to bf16 (matching kernel math)."""
    N, C, H, W = feature_nchw.shape
    A = params["w_cls"].shape[0]
    q = lambda a: a.astype(jnp.bfloat16).astype(jnp.float32)

    x = q(feature_nchw)
    # (9, Cout, Cin) -> OIHW
    w_oihw = q(jnp.transpose(params["w_conv"].reshape(3, 3, C, C), (2, 3, 0, 1)))
    t = jax.lax.conv_general_dilated(
        x, w_oihw, (1, 1), "SAME",
        dimension_numbers=("NCHW", "OIHW", "NCHW"),
        precision=jax.lax.Precision.HIGHEST)
    t = jnp.maximum(t + params["b_conv"].reshape(1, C, 1, 1), 0.0)
    tq = q(t)
    logits = jnp.einsum("nchw,ac->nahw", tq, q(params["w_cls"]),
                        precision=jax.lax.Precision.HIGHEST) + params["b_cls"].reshape(1, A, 1, 1)
    bbox = jnp.einsum("nchw,ac->nahw", tq, q(params["w_box"]),
                      precision=jax.lax.Precision.HIGHEST) + params["b_box"].reshape(1, 4 * A, 1, 1)
    return logits, bbox


def init_params(key, in_channels, num_anchors):
    ks = jax.random.split(key, 6)
    C, A = in_channels, num_anchors
    return {
        "w_conv": 0.1 * jax.random.normal(ks[0], (9, C, C), jnp.float32),     # (tap, C_out, C_in)
        "b_conv": 0.1 * jax.random.normal(ks[1], (C, 1), jnp.float32),
        "w_cls":  0.1 * jax.random.normal(ks[2], (A, C), jnp.float32),        # (C_out, C_in)
        "b_cls":  0.1 * jax.random.normal(ks[3], (A, 1), jnp.float32),
        "w_box":  0.1 * jax.random.normal(ks[4], (4 * A, C), jnp.float32),
        "b_box":  0.1 * jax.random.normal(ks[5], (4 * A, 1), jnp.float32),
    }


if __name__ == "__main__":
    N, C, H, W = 2, 4, 16, 16
    num_anchors = 3

    key = jax.random.PRNGKey(0)
    k_feat, k_params = jax.random.split(key)
    feature = jax.random.normal(k_feat, (N, C, H, W), jnp.float32)
    params = init_params(k_params, C, num_anchors)

    objectness_map, bbox_reg = rpn_head(feature, params)
    jax.block_until_ready((objectness_map, bbox_reg))

    ref_logits, ref_bbox = _reference_rpn_head(feature, params)
    assert objectness_map.shape == (N, num_anchors, H, W)
    assert bbox_reg.shape == (N, num_anchors * 4, H, W)
    assert jnp.allclose(objectness_map, jax.nn.sigmoid(ref_logits), atol=1e-3, rtol=1e-3)
    assert jnp.allclose(bbox_reg, ref_bbox, atol=1e-3, rtol=1e-3)

    objectness, bbox_flat = rpn_forward(feature, params)
    jax.block_until_ready((objectness, bbox_flat))
    assert objectness.shape == (N, H * W * num_anchors)
    assert bbox_flat.shape == (N, H * W * num_anchors, 4)

    print("KERNEL_OK")
</pallas_src>

<mosaic_0001>
module attributes {stable_mosaic.version = 11 : i64} {
  func.func @kernel(%arg0: i32, %arg1: memref<1x4x256xf32, #tpu.memory_space<vmem>>, %arg2: memref<2x256xf32, #tpu.memory_space<vmem>>, %arg3: memref<9x4x4xbf16, #tpu.memory_space<vmem>>, %arg4: memref<4x1xf32, #tpu.memory_space<vmem>>, %arg5: memref<15x4xbf16, #tpu.memory_space<vmem>>, %arg6: memref<15x1xf32, #tpu.memory_space<vmem>>, %arg7: memref<1x3x256xf32, #tpu.memory_space<vmem>>, %arg8: memref<1x12x256xf32, #tpu.memory_space<vmem>>, %arg9: memref<4x320xbf16, #tpu.memory_space<vmem>>) attributes {dimension_semantics = [#tpu.dimension_semantics<parallel>], iteration_bounds = array<i64: 2>, scalar_prefetch = 0 : i64, scratch_operands = 1 : i64, tpu.core_type = #tpu.core_type<tc>, window_params = [{transform_indices = @transform_0, window_bounds = array<i64: 1, 4, 256>}, {pipeline_mode = #tpu.pipeline_mode<synchronous>, transform_indices = @transform_1, window_bounds = array<i64: 2, 256>}, {pipeline_mode = #tpu.pipeline_mode<synchronous>, transform_indices = @transform_2, window_bounds = array<i64: 9, 4, 4>}, {pipeline_mode = #tpu.pipeline_mode<synchronous>, transform_indices = @transform_3, window_bounds = array<i64: 4, 1>}, {pipeline_mode = #tpu.pipeline_mode<synchronous>, transform_indices = @transform_4, window_bounds = array<i64: 15, 4>}, {pipeline_mode = #tpu.pipeline_mode<synchronous>, transform_indices = @transform_5, window_bounds = array<i64: 15, 1>}, {transform_indices = @transform_6, window_bounds = array<i64: 1, 3, 256>}, {transform_indices = @transform_7, window_bounds = array<i64: 1, 12, 256>}]} {
    %cst = arith.constant 0.000000e+00 : bf16
    %0 = vector.broadcast %cst : bf16 to vector<4x32xbf16>
    %c0 = arith.constant 0 : index
    %c0_0 = arith.constant 0 : index
    %1 = vector.load %arg9[%c0, %c0_0] : memref<4x320xbf16, #tpu.memory_space<vmem>>, vector<4x32xbf16>
    tpu.vector_store %arg9[%c0, %c0_0], %0 {strides = array<i32>} : memref<4x320xbf16, #tpu.memory_space<vmem>>, vector<4x32xbf16>,
    %c0_1 = arith.constant 0 : index
    %c288 = arith.constant 288 : index
    %2 = vector.load %arg9[%c0_1, %c288] : memref<4x320xbf16, #tpu.memory_space<vmem>>, vector<4x32xbf16>
    tpu.vector_store %arg9[%c0_1, %c288], %0 {strides = array<i32>} : memref<4x320xbf16, #tpu.memory_space<vmem>>, vector<4x32xbf16>,
    %c0_2 = arith.constant 0 : index
    %c0_3 = arith.constant 0 : index
    %c0_4 = arith.constant 0 : index
    %3 = vector.load %arg1[%c0_2, %c0_3, %c0_4] : memref<1x4x256xf32, #tpu.memory_space<vmem>>, vector<1x4x256xf32>
    %4 = vector.shape_cast %3 : vector<1x4x256xf32> to vector<4x256xf32>
    %5 = arith.truncf %4 : vector<4x256xf32> to vector<4x256xbf16>
    %c0_5 = arith.constant 0 : index
    %c32 = arith.constant 32 : index
    %6 = vector.load %arg9[%c0_5, %c32] : memref<4x320xbf16, #tpu.memory_space<vmem>>, vector<4x256xbf16>
    tpu.vector_store %arg9[%c0_5, %c32], %5 {strides = array<i32>} : memref<4x320xbf16, #tpu.memory_space<vmem>>, vector<4x256xbf16>,
    %c0_6 = arith.constant 0 : index
    %c0_7 = arith.constant 0 : index
    %7 = vector.load %arg2[%c0_6, %c0_7] : memref<2x256xf32, #tpu.memory_space<vmem>>, vector<1x256xf32>
    %c1 = arith.constant 1 : index
    %c0_8 = arith.constant 0 : index
    %8 = vector.load %arg2[%c1, %c0_8] : memref<2x256xf32, #tpu.memory_space<vmem>>, vector<1x256xf32>
    %c0_9 = arith.constant 0 : index
    %c15 = arith.constant 15 : index
    %9 = vector.load %arg9[%c0_9, %c15] : memref<4x320xbf16, #tpu.memory_space<vmem>>, vector<4x256xbf16>
    %c0_10 = arith.constant 0 : index
    %c0_11 = arith.constant 0 : index
    %c0_12 = arith.constant 0 : index
    %10 = vector.load %arg3[%c0_10, %c0_11, %c0_12] : memref<9x4x4xbf16, #tpu.memory_space<vmem>>, vector<1x4x4xbf16>
    %11 = vector.shape_cast %10 : vector<1x4x4xbf16> to vector<4x4xbf16>
    %cst_13 = arith.constant dense<0.000000e+00> : vector<4x256xf32>
    %12 = tpu.matmul %11, %9, %cst_13 {dimension_numbers = #tpu.dot_dimension_numbers<[1], [0], [0], [1], [0, 0, 1, 1], [], []>} : vector<4x4xbf16>, vector<4x256xbf16>, vector<4x256xf32> -> vector<4x256xf32>
    %13 = vector.broadcast %7 : vector<1x256xf32> to vector<4x256xf32>
    %14 = arith.mulf %12, %13 : vector<4x256xf32>
    %c0_14 = arith.constant 0 : index
    %c16 = arith.constant 16 : index
    %15 = vector.load %arg9[%c0_14, %c16] : memref<4x320xbf16, #tpu.memory_space<vmem>>, vector<4x256xbf16>
    %c1_15 = arith.constant 1 : index
    %c0_16 = arith.constant 0 : index
    %c0_17 = arith.constant 0 : index
    %16 = vector.load %arg3[%c1_15, %c0_16, %c0_17] : memref<9x4x4xbf16, #tpu.memory_space<vmem>>, vector<1x4x4xbf16>
    %17 = vector.shape_cast %16 : vector<1x4x4xbf16> to vector<4x4xbf16>
    %cst_18 = arith.constant dense<0.000000e+00> : vector<4x256xf32>
    %18 = tpu.matmul %17, %15, %cst_18 {dimension_numbers = #tpu.dot_dimension_numbers<[1], [0], [0], [1], [0, 0, 1, 1], [], []>} : vector<4x4xbf16>, vector<4x256xbf16>, vector<4x256xf32> -> vector<4x256xf32>
    %19 = arith.addf %14, %18 : vector<4x256xf32>
    %c0_19 = arith.constant 0 : index
    %c17 = arith.constant 17 : index
    %20 = vector.load %arg9[%c0_19, %c17] : memref<4x320xbf16, #tpu.memory_space<vmem>>, vector<4x256xbf16>
    %c2 = arith.constant 2 : index
    %c0_20 = arith.constant 0 : index
    %c0_21 = arith.constant 0 : index
    %21 = vector.load %arg3[%c2, %c0_20, %c0_21] : memref<9x4x4xbf16, #tpu.memory_space<vmem>>, vector<1x4x4xbf16>
    %22 = vector.shape_cast %21 : vector<1x4x4xbf16> to vector<4x4xbf16>
    %cst_22 = arith.constant dense<0.000000e+00> : vector<4x256xf32>
    %23 = tpu.matmul %22, %20, %cst_22 {dimension_numbers = #tpu.dot_dimension_numbers<[1], [0], [0], [1], [0, 0, 1, 1], [], []>} : vector<4x4xbf16>, vector<4x256xbf16>, vector<4x256xf32> -> vector<4x256xf32>
    %24 = vector.broadcast %8 : vector<1x256xf32> to vector<4x256xf32>
    %25 = arith.mulf %23, %24 : vector<4x256xf32>
    %26 = arith.addf %19, %25 : vector<4x256xf32>
    %c0_23 = arith.constant 0 : index
    %c31 = arith.constant 31 : index
    %27 = vector.load %arg9[%c0_23, %c31] : memref<4x320xbf16, #tpu.memory_space<vmem>>, vector<4x256xbf16>
    %c3 = arith.constant 3 : index
    %c0_24 = arith.constant 0 : index
    %c0_25 = arith.constant 0 : index
    %28 = vector.load %arg3[%c3, %c0_24, %c0_25] : memref<9x4x4xbf16, #tpu.memory_space<vmem>>, vector<1x4x4xbf16>
    %29 = vector.shape_cast %28 : vector<1x4x4xbf16> to vector<4x4xbf16>
    %cst_26 = arith.constant dense<0.000000e+00> : vector<4x256xf32>
    %30 = tpu.matmul %29, %27, %cst_26 {dimension_numbers = #tpu.dot_dimension_numbers<[1], [0], [0], [1], [0, 0, 1, 1], [], []>} : vector<4x4xbf16>, vector<4x256xbf16>, vector<4x256xf32> -> vector<4x256xf32>
    %31 = vector.broadcast %7 : vector<1x256xf32> to vector<4x256xf32>
    %32 = arith.mulf %30, %31 : vector<4x256xf32>
    %33 = arith.addf %26, %32 : vector<4x256xf32>
    %c0_27 = arith.constant 0 : index
    %c32_28 = arith.constant 32 : index
    %34 = vector.load %arg9[%c0_27, %c32_28] : memref<4x320xbf16, #tpu.memory_space<vmem>>, vector<4x256xbf16>
    %c4 = arith.constant 4 : index
    %c0_29 = arith.constant 0 : index
    %c0_30 = arith.constant 0 : index
    %35 = vector.load %arg3[%c4, %c0_29, %c0_30] : memref<9x4x4xbf16, #tpu.memory_space<vmem>>, vector<1x4x4xbf16>
    %36 = vector.shape_cast %35 : vector<1x4x4xbf16> to vector<4x4xbf16>
    %cst_31 = arith.constant dense<0.000000e+00> : vector<4x256xf32>
    %37 = tpu.matmul %36, %34, %cst_31 {dimension_numbers = #tpu.dot_dimension_numbers<[1], [0], [0], [1], [0, 0, 1, 1], [], []>} : vector<4x4xbf16>, vector<4x256xbf16>, vector<4x256xf32> -> vector<4x256xf32>
    %38 = arith.addf %33, %37 : vector<4x256xf32>
    %c0_32 = arith.constant 0 : index
    %c33 = arith.constant 33 : index
    %39 = vector.load %arg9[%c0_32, %c33] : memref<4x320xbf16, #tpu.memory_space<vmem>>, vector<4x256xbf16>
    %c5 = arith.constant 5 : index
    %c0_33 = arith.constant 0 : index
    %c0_34 = arith.constant 0 : index
    %40 = vector.load %arg3[%c5, %c0_33, %c0_34] : memref<9x4x4xbf16, #tpu.memory_space<vmem>>, vector<1x4x4xbf16>
    %41 = vector.shape_cast %40 : vector<1x4x4xbf16> to vector<4x4xbf16>
    %cst_35 = arith.constant dense<0.000000e+00> : vector<4x256xf32>
    %42 = tpu.matmul %41, %39, %cst_35 {dimension_numbers = #tpu.dot_dimension_numbers<[1], [0], [0], [1], [0, 0, 1, 1], [], []>} : vector<4x4xbf16>, vector<4x256xbf16>, vector<4x256xf32> -> vector<4x256xf32>
    %43 = vector.broadcast %8 : vector<1x256xf32> to vector<4x256xf32>
    %44 = arith.mulf %42, %43 : vector<4x256xf32>
    %45 = arith.addf %38, %44 : vector<4x256xf32>
    %c0_36 = arith.constant 0 : index
    %c47 = arith.constant 47 : index
    %46 = vector.load %arg9[%c0_36, %c47] : memref<4x320xbf16, #tpu.memory_space<vmem>>, vector<4x256xbf16>
    %c6 = arith.constant 6 : index
    %c0_37 = arith.constant 0 : index
    %c0_38 = arith.constant 0 : index
    %47 = vector.load %arg3[%c6, %c0_37, %c0_38] : memref<9x4x4xbf16, #tpu.memory_space<vmem>>, vector<1x4x4xbf16>
    %48 = vector.shape_cast %47 : vector<1x4x4xbf16> to vector<4x4xbf16>
    %cst_39 = arith.constant dense<0.000000e+00> : vector<4x256xf32>
    %49 = tpu.matmul %48, %46, %cst_39 {dimension_numbers = #tpu.dot_dimension_numbers<[1], [0], [0], [1], [0, 0, 1, 1], [], []>} : vector<4x4xbf16>, vector<4x256xbf16>, vector<4x256xf32> -> vector<4x256xf32>
    %50 = vector.broadcast %7 : vector<1x256xf32> to vector<4x256xf32>
    %51 = arith.mulf %49, %50 : vector<4x256xf32>
    %52 = arith.addf %45, %51 : vector<4x256xf32>
    %c0_40 = arith.constant 0 : index
    %c48 = arith.constant 48 : index
    %53 = vector.load %arg9[%c0_40, %c48] : memref<4x320xbf16, #tpu.memory_space<vmem>>, vector<4x256xbf16>
    %c7 = arith.constant 7 : index
    %c0_41 = arith.constant 0 : index
    %c0_42 = arith.constant 0 : index
    %54 = vector.load %arg3[%c7, %c0_41, %c0_42] : memref<9x4x4xbf16, #tpu.memory_space<vmem>>, vector<1x4x4xbf16>
    %55 = vector.shape_cast %54 : vector<1x4x4xbf16> to vector<4x4xbf16>
    %cst_43 = arith.constant dense<0.000000e+00> : vector<4x256xf32>
    %56 = tpu.matmul %55, %53, %cst_43 {dimension_numbers = #tpu.dot_dimension_numbers<[1], [0], [0], [1], [0, 0, 1, 1], [], []>} : vector<4x4xbf16>, vector<4x256xbf16>, vector<4x256xf32> -> vector<4x256xf32>
    %57 = arith.addf %52, %56 : vector<4x256xf32>
    %c0_44 = arith.constant 0 : index
    %c49 = arith.constant 49 : index
    %58 = vector.load %arg9[%c0_44, %c49] : memref<4x320xbf16, #tpu.memory_space<vmem>>, vector<4x256xbf16>
    %c8 = arith.constant 8 : index
    %c0_45 = arith.constant 0 : index
    %c0_46 = arith.constant 0 : index
    %59 = vector.load %arg3[%c8, %c0_45, %c0_46] : memref<9x4x4xbf16, #tpu.memory_space<vmem>>, vector<1x4x4xbf16>
    %60 = vector.shape_cast %59 : vector<1x4x4xbf16> to vector<4x4xbf16>
    %cst_47 = arith.constant dense<0.000000e+00> : vector<4x256xf32>
    %61 = tpu.matmul %60, %58, %cst_47 {dimension_numbers = #tpu.dot_dimension_numbers<[1], [0], [0], [1], [0, 0, 1, 1], [], []>} : vector<4x4xbf16>, vector<4x256xbf16>, vector<4x256xf32> -> vector<4x256xf32>
    %62 = vector.broadcast %8 : vector<1x256xf32> to vector<4x256xf32>
    %63 = arith.mulf %61, %62 : vector<4x256xf32>
    %64 = arith.addf %57, %63 : vector<4x256xf32>
    %c0_48 = arith.constant 0 : index
    %c0_49 = arith.constant 0 : index
    %65 = vector.load %arg4[%c0_48, %c0_49] : memref<4x1xf32, #tpu.memory_space<vmem>>, vector<4x1xf32>
    %66 = vector.broadcast %65 : vector<4x1xf32> to vector<4x256xf32>
    %67 = arith.addf %64, %66 : vector<4x256xf32>
    %cst_50 = arith.constant 0.000000e+00 : f32
    %68 = vector.broadcast %cst_50 : f32 to vector<4x256xf32>
    %69 = arith.maximumf %67, %68 : vector<4x256xf32>
    %c0_51 = arith.constant 0 : index
    %c0_52 = arith.constant 0 : index
    %70 = vector.load %arg5[%c0_51, %c0_52] : memref<15x4xbf16, #tpu.memory_space<vmem>>, vector<15x4xbf16>
    %71 = arith.truncf %69 : vector<4x256xf32> to vector<4x256xbf16>
    %cst_53 = arith.constant dense<0.000000e+00> : vector<15x256xf32>
    %72 = tpu.matmul %70, %71, %cst_53 {dimension_numbers = #tpu.dot_dimension_numbers<[1], [0], [0], [1], [0, 0, 1, 1], [], []>} : vector<15x4xbf16>, vector<4x256xbf16>, vector<15x256xf32> -> vector<15x256xf32>
    %c0_54 = arith.constant 0 : index
    %c0_55 = arith.constant 0 : index
    %73 = vector.load %arg6[%c0_54, %c0_55] : memref<15x1xf32, #tpu.memory_space<vmem>>, vector<15x1xf32>
    %74 = vector.broadcast %73 : vector<15x1xf32> to vector<15x256xf32>
    %75 = arith.addf %72, %74 : vector<15x256xf32>
    %76 = vector.extract_strided_slice %75 {offsets = [0, 0], sizes = [3, 256], strides = [1, 1]} : vector<15x256xf32> to vector<3x256xf32>
    %cst_56 = arith.constant 0.000000e+00 : f32
    %77 = vector.broadcast %cst_56 : f32 to vector<3x256xf32>
    %78 = arith.subf %77, %76 : vector<3x256xf32>
    %79 = math.exp %78 : vector<3x256xf32>
    %cst_57 = arith.constant 1.000000e+00 : f32
    %80 = vector.broadcast %cst_57 : f32 to vector<3x256xf32>
    %81 = arith.addf %80, %79 : vector<3x256xf32>
    %cst_58 = arith.constant 1.000000e+00 : f32
    %82 = vector.broadcast %cst_58 : f32 to vector<3x256xf32>
    %83 = arith.divf %82, %81 : vector<3x256xf32>
    %c0_59 = arith.constant 0 : index
    %c0_60 = arith.constant 0 : index
    %c0_61 = arith.constant 0 : index
    %84 = vector.load %arg7[%c0_59, %c0_60, %c0_61] : memref<1x3x256xf32, #tpu.memory_space<vmem>>, vector<1x3x256xf32>
    %85 = vector.shape_cast %84 : vector<1x3x256xf32> to vector<3x256xf32>
    %86 = vector.shape_cast %83 : vector<3x256xf32> to vector<1x3x256xf32>
    tpu.vector_store %arg7[%c0_59, %c0_60, %c0_61], %86 {strides = array<i32>} : memref<1x3x256xf32, #tpu.memory_space<vmem>>, vector<1x3x256xf32>,
    %87 = vector.extract_strided_slice %75 {offsets = [3, 0], sizes = [12, 256], strides = [1, 1]} : vector<15x256xf32> to vector<12x256xf32>
    %c0_62 = arith.constant 0 : index
    %c0_63 = arith.constant 0 : index
    %c0_64 = arith.constant 0 : index
    %88 = vector.load %arg8[%c0_62, %c0_63, %c0_64] : memref<1x12x256xf32, #tpu.memory_space<vmem>>, vector<1x12x256xf32>
    %89 = vector.shape_cast %88 : vector<1x12x256xf32> to vector<12x256xf32>
    %90 = vector.shape_cast %87 : vector<12x256xf32> to vector<1x12x256xf32>
    tpu.vector_store %arg8[%c0_62, %c0_63, %c0_64], %90 {strides = array<i32>} : memref<1x12x256xf32, #tpu.memory_space<vmem>>, vector<1x12x256xf32>,
    return
  }
  func.func @transform_0(%arg0: i32) -> (i32, i32, i32) {
    %c0_i32 = arith.constant 0 : i32
    %c0_i32_0 = arith.constant 0 : i32
    %c0_i32_1 = arith.constant 0 : i32
    return %arg0, %c0_i32, %c0_i32_0 : i32, i32, i32
  }
  func.func @transform_1(%arg0: i32) -> (i32, i32) {
    %c0_i32 = arith.constant 0 : i32
    %c0_i32_0 = arith.constant 0 : i32
    %c0_i32_1 = arith.constant 0 : i32
    return %c0_i32, %c0_i32_0 : i32, i32
  }
  func.func @transform_2(%arg0: i32) -> (i32, i32, i32) {
    %c0_i32 = arith.constant 0 : i32
    %c0_i32_0 = arith.constant 0 : i32
    %c0_i32_1 = arith.constant 0 : i32
    %c0_i32_2 = arith.constant 0 : i32
    return %c0_i32, %c0_i32_0, %c0_i32_1 : i32, i32, i32
  }
  func.func @transform_3(%arg0: i32) -> (i32, i32) {
    %c0_i32 = arith.constant 0 : i32
    %c0_i32_0 = arith.constant 0 : i32
    %c0_i32_1 = arith.constant 0 : i32
    return %c0_i32, %c0_i32_0 : i32, i32
  }
  func.func @transform_4(%arg0: i32) -> (i32, i32) {
    %c0_i32 = arith.constant 0 : i32
    %c0_i32_0 = arith.constant 0 : i32
    %c0_i32_1 = arith.constant 0 : i32
    return %c0_i32, %c0_i32_0 : i32, i32
  }
  func.func @transform_5(%arg0: i32) -> (i32, i32) {
    %c0_i32 = arith.constant 0 : i32
    %c0_i32_0 = arith.constant 0 : i32
    %c0_i32_1 = arith.constant 0 : i32
    return %c0_i32, %c0_i32_0 : i32, i32
  }
  func.func @transform_6(%arg0: i32) -> (i32, i32, i32) {
    %c0_i32 = arith.constant 0 : i32
    %c0_i32_0 = arith.constant 0 : i32
    %c0_i32_1 = arith.constant 0 : i32
    return %arg0, %c0_i32, %c0_i32_0 : i32, i32, i32
  }
  func.func @transform_7(%arg0: i32) -> (i32, i32, i32) {
    %c0_i32 = arith.constant 0 : i32
    %c0_i32_0 = arith.constant 0 : i32
    %c0_i32_1 = arith.constant 0 : i32
    return %arg0, %c0_i32, %c0_i32_0 : i32, i32, i32
  }
}

</mosaic_0001>

<llo_original>
// kernel: tpu_custom_call.1
$region0: #{tpu_custom_call.1}
  #allocation0 [shape = 'u32[]', space=smem, size = 0x4, offset = 0x4, fixed_abs, tag = 'smem constant byte address 0x4 - core index']
  #allocation1 [shape = 'u32[144,128]{1,0:T(1,128)}', space=vmem, size = 0x12000, scoped, tag = 'internal scratch']
  #allocation2 [shape = 'bf16[4,320]{1,0:T(4,128)(2,1)}', space=vmem, size = 0xc00, scoped, tag = 'scratch operand']
  %s0 = inlined_call_operand.vmem [shape: f32[2,4,256], index: 0, kind: input, shape index: {}]
  %s1 = inlined_call_operand.vmem [shape: f32[2,256], index: 1, kind: input, shape index: {}]
  %s2 = inlined_call_operand.vmem [shape: bf16[9,4,4], index: 2, kind: input, shape index: {}]
  %s3 = inlined_call_operand.vmem [shape: f32[4,1], index: 3, kind: input, shape index: {}]
  %s4 = inlined_call_operand.vmem [shape: bf16[15,4], index: 4, kind: input, shape index: {}]
  %s5 = inlined_call_operand.vmem [shape: f32[15,1], index: 5, kind: input, shape index: {}]
  %s6 = inlined_call_operand.vmem [shape: f32[2,3,256], index: 6, kind: output, shape index: {0}]
  %s7 = inlined_call_operand.vmem [shape: f32[2,12,256], index: 7, kind: output, shape index: {1}]
  %8 = xla_tuple %s6, %s7
  %s9 = sld [smem:[#allocation0]]
  $region65: #{tpu_custom_call.1} parent=0
    _
  %s11 = ssub.s32 1, %s9
  %s12 = scalar_select 0, %s11, %s9
  loop: start=0, step=1, limit=4
  $region2: #{tpu_custom_call.1} parent=0 // loop_pre_header
    _
  $region3: #{tpu_custom_call.1} parent=0 // loop_header
    %s14 = sphi 0, %s18
    %p15 = scmp.ge.s32.totalorder %s14, 4
    %s24 = sphi 0, %s26
    %s27 = sphi 0, %s24
    %s28 = sphi 0, %s27
    %s44 = sphi 0, %s28
    %s48 = sphi 0, %s48
    %s50 = sphi 0, %s48
    %s51 = sphi 0, %s50
    %s65 = sphi 0, %s51
    %s69 = sphi 0, %s69
    %s71 = sphi 0, %s69
    %s72 = sphi 0, %s71
    %s86 = sphi 0, %s72
    %s90 = sphi 0, %s90
    %s92 = sphi 0, %s90
    %s93 = sphi 0, %s92
    %s107 = sphi 0, %s93
    %s111 = sphi 0, %s111
    %s113 = sphi 0, %s111
    %s114 = sphi 0, %s113
    %s128 = sphi 0, %s114
    %s132 = sphi 0, %s132
    %s134 = sphi 0, %s132
    %s135 = sphi 0, %s134
    %s149 = sphi 0, %s135
    %s155 = sphi 0, %s157
    %s158 = sphi 0, %s155
    %s159 = sphi 0, %s158
    %s175 = sphi 0, %s159
    %s181 = sphi 0, %s183
    %s184 = sphi 0, %s181
    %s185 = sphi 0, %s184
    %s201 = sphi 0, %s185
  $region4: #{tpu_custom_call.1} parent=0 // loop_header_branch
    %17 = sbr.rel (%p15) target = $region8
  $region5: #{tpu_custom_call.1} parent=0 // loop_body
    %s19 = ssub.s32 %s14, 1
    %s20 = ssub.s32 %s14, 2
    %s21 = sadd.s32 %s14, 1
    %s22 = ssub.s32 %s14, %s21
    %p23 = scmp.eq.s32.totalorder %s22, 0
    %s25 = sadd.s32 %s24, 1
    %s26 = scalar_select %p23, %s24, %s25
    %p29 = pneg %p23
    %p30 = scmp.eq.s32.totalorder %s14, 1
    %p31 = por %p29, %p30
    %p32 = scmp.ne.s32.totalorder %s24, %s27
    %p33 = scmp.eq.s32.totalorder %s14, 0
    %p34 = por %p32, %p33
    %p35 = scmp.ne.s32.totalorder %s24, %s27
    %p36 = scmp.eq.s32.totalorder %s19, 1
    %p37 = por %p35, %p36
    %p38 = scmp.ne.s32.totalorder %s27, %s28
    %p39 = scmp.eq.s32.totalorder %s19, 0
    %p40 = por %p38, %p39
    %p41 = scmp.ne.s32.totalorder %s27, %s28
    %p42 = scmp.eq.s32.totalorder %s20, 1
    %p43 = por %p41, %p42
    %p45 = scmp.ne.s32.totalorder %s28, %s44
    %p46 = scmp.eq.s32.totalorder %s20, 0
    %p47 = por %p45, %p46
    %s49 = sadd.s32 %s48, 1
    %p52 = scmp.eq.s32.totalorder %s14, 1
    %p53 = scmp.ne.s32.totalorder %s48, %s50
    %p54 = scmp.eq.s32.totalorder %s14, 0
    %p55 = por %p53, %p54
    %p56 = scmp.ne.s32.totalorder %s48, %s50
    %p57 = scmp.eq.s32.totalorder %s19, 1
    %p58 = por %p56, %p57
    %p59 = scmp.ne.s32.totalorder %s50, %s51
    %p60 = scmp.eq.s32.totalorder %s19, 0
    %p61 = por %p59, %p60
    %p62 = scmp.ne.s32.totalorder %s50, %s51
    %p63 = scmp.eq.s32.totalorder %s20, 1
    %p64 = por %p62, %p63
    %p66 = scmp.ne.s32.totalorder %s51, %s65
    %p67 = scmp.eq.s32.totalorder %s20, 0
    %p68 = por %p66, %p67
    %s70 = sadd.s32 %s69, 1
    %p73 = scmp.eq.s32.totalorder %s14, 1
    %p74 = scmp.ne.s32.totalorder %s69, %s71
    %p75 = scmp.eq.s32.totalorder %s14, 0
    %p76 = por %p74, %p75
    %p77 = scmp.ne.s32.totalorder %s69, %s71
    %p78 = scmp.eq.s32.totalorder %s19, 1
    %p79 = por %p77, %p78
    %p80 = scmp.ne.s32.totalorder %s71, %s72
    %p81 = scmp.eq.s32.totalorder %s19, 0
    %p82 = por %p80, %p81
    %p83 = scmp.ne.s32.totalorder %s71, %s72
    %p84 = scmp.eq.s32.totalorder %s20, 1
    %p85 = por %p83, %p84
    %p87 = scmp.ne.s32.totalorder %s72, %s86
    %p88 = scmp.eq.s32.totalorder %s20, 0
    %p89 = por %p87, %p88
    %s91 = sadd.s32 %s90, 1
    %p94 = scmp.eq.s32.totalorder %s14, 1
    %p95 = scmp.ne.s32.totalorder %s90, %s92
    %p96 = scmp.eq.s32.totalorder %s14, 0
    %p97 = por %p95, %p96
    %p98 = scmp.ne.s32.totalorder %s90, %s92
    %p99 = scmp.eq.s32.totalorder %s19, 1
    %p100 = por %p98, %p99
    %p101 = scmp.ne.s32.totalorder %s92, %s93
    %p102 = scmp.eq.s32.totalorder %s19, 0
    %p103 = por %p101, %p102
    %p104 = scmp.ne.s32.totalorder %s92, %s93
    %p105 = scmp.eq.s32.totalorder %s20, 1
    %p106 = por %p104, %p105
    %p108 = scmp.ne.s32.totalorder %s93, %s107
    %p109 = scmp.eq.s32.totalorder %s20, 0
    %p110 = por %p108, %p109
    %s112 = sadd.s32 %s111, 1
    %p115 = scmp.eq.s32.totalorder %s14, 1
    %p116 = scmp.ne.s32.totalorder %s111, %s113
    %p117 = scmp.eq.s32.totalorder %s14, 0
    %p118 = por %p116, %p117
    %p119 = scmp.ne.s32.totalorder %s111, %s113
    %p120 = scmp.eq.s32.totalorder %s19, 1
    %p121 = por %p119, %p120
    %p122 = scmp.ne.s32.totalorder %s113, %s114
    %p123 = scmp.eq.s32.totalorder %s19, 0
    %p124 = por %p122, %p123
    %p125 = scmp.ne.s32.totalorder %s113, %s114
    %p126 = scmp.eq.s32.totalorder %s20, 1
    %p127 = por %p125, %p126
    %p129 = scmp.ne.s32.totalorder %s114, %s128
    %p130 = scmp.eq.s32.totalorder %s20, 0
    %p131 = por %p129, %p130
    %s133 = sadd.s32 %s132, 1
    %p136 = scmp.eq.s32.totalorder %s14, 1
    %p137 = scmp.ne.s32.totalorder %s132, %s134
    %p138 = scmp.eq.s32.totalorder %s14, 0
    %p139 = por %p137, %p138
    %p140 = scmp.ne.s32.totalorder %s132, %s134
    %p141 = scmp.eq.s32.totalorder %s19, 1
    %p142 = por %p140, %p141
    %p143 = scmp.ne.s32.totalorder %s134, %s135
    %p144 = scmp.eq.s32.totalorder %s19, 0
    %p145 = por %p143, %p144
    %p146 = scmp.ne.s32.totalorder %s134, %s135
    %p147 = scmp.eq.s32.totalorder %s20, 1
    %p148 = por %p146, %p147
    %p150 = scmp.ne.s32.totalorder %s135, %s149
    %p151 = scmp.eq.s32.totalorder %s20, 0
    %p152 = por %p150, %p151
    %s153 = ssub.s32 %s14, %s21
    %p154 = scmp.eq.s32.totalorder %s153, 0
    %s156 = sadd.s32 %s155, 1
    %s157 = scalar_select %p154, %s155, %s156
    %p160 = pneg %p154
    %p161 = scmp.eq.s32.totalorder %s14, 1
    %p162 = por %p160, %p161
    %p163 = scmp.ne.s32.totalorder %s155, %s158
    %p164 = scmp.eq.s32.totalorder %s14, 0
    %p165 = por %p163, %p164
    %p166 = scmp.ne.s32.totalorder %s155, %s158
    %p167 = scmp.eq.s32.totalorder %s19, 1
    %p168 = por %p166, %p167
    %p169 = scmp.ne.s32.totalorder %s158, %s159
    %p170 = scmp.eq.s32.totalorder %s19, 0
    %p171 = por %p169, %p170
    %p172 = scmp.ne.s32.totalorder %s158, %s159
    %p173 = scmp.eq.s32.totalorder %s20, 1
    %p174 = por %p172, %p173
    %p176 = scmp.ne.s32.totalorder %s159, %s175
    %p177 = scmp.eq.s32.totalorder %s20, 0
    %p178 = por %p176, %p177
    %s179 = ssub.s32 %s14, %s21
    %p180 = scmp.eq.s32.totalorder %s179, 0
    %s182 = sadd.s32 %s181, 1
    %s183 = scalar_select %p180, %s181, %s182
    %p186 = pneg %p180
    %p187 = scmp.eq.s32.totalorder %s14, 1
    %p188 = por %p186, %p187
    %p189 = scmp.ne.s32.totalorder %s181, %s184
    %p190 = scmp.eq.s32.totalorder %s14, 0
    %p191 = por %p189, %p190
    %p192 = scmp.ne.s32.totalorder %s181, %s184
    %p193 = scmp.eq.s32.totalorder %s19, 1
    %p194 = por %p192, %p193
    %p195 = scmp.ne.s32.totalorder %s184, %s185
    %p196 = scmp.eq.s32.totalorder %s19, 0
    %p197 = por %p195, %p196
    %p198 = scmp.ne.s32.totalorder %s184, %s185
    %p199 = scmp.eq.s32.totalorder %s20, 1
    %p200 = por %p198, %p199
    %p202 = scmp.ne.s32.totalorder %s185, %s201
    %p203 = scmp.eq.s32.totalorder %s20, 0
    %p204 = por %p202, %p203
    %p205 = scmp.le.s32.totalorder 1, %s14
    %p206 = scmp.lt.s32.totalorder %s14, 3
    %p207 = pnand %p205, %p206
    %p208 = pneg %p207
    // Predicated region
    $region9: #{tpu_custom_call.1} parent=5 // pred_check
      _
    $region10: #{tpu_custom_call.1} parent=5 // pred_check_branch
      %210 = sbr.rel (%p207) target = $region12
    $region11: #{tpu_custom_call.1} parent=5 // pred_region
      %s211 = ssub.s32 %s14, 1
      // Predicated region
      $region13: #{tpu_custom_call.1} parent=11 // pred_check
        %p212 = pneg %p61
      $region14: #{tpu_custom_call.1} parent=11 // pred_check_branch
        %214 = sbr.rel (%p212) target = $region16
      $region15: #{tpu_custom_call.1} parent=11 // pred_region
        _
      $region16: #{tpu_custom_call.1} parent=11 // pred_fallthru
        _
      // Predicated region
      $region17: #{tpu_custom_call.1} parent=11 // pred_check
        %p215 = pneg %p82
      $region18: #{tpu_custom_call.1} parent=11 // pred_check_branch
        %217 = sbr.rel (%p215) target = $region20
      $region19: #{tpu_custom_call.1} parent=11 // pred_region
        _
      $region20: #{tpu_custom_call.1} parent=11 // pred_fallthru
        _
      // Predicated region
      $region21: #{tpu_custom_call.1} parent=11 // pred_check
        %p218 = pneg %p103
      $region22: #{tpu_custom_call.1} parent=11 // pred_check_branch
        %220 = sbr.rel (%p218) target = $region24
      $region23: #{tpu_custom_call.1} parent=11 // pred_region
        _
      $region24: #{tpu_custom_call.1} parent=11 // pred_fallthru
        _
      // Predicated region
      $region25: #{tpu_custom_call.1} parent=11 // pred_check
        %p221 = pneg %p124
      $region26: #{tpu_custom_call.1} parent=11 // pred_check_branch
        %223 = sbr.rel (%p221) target = $region28
      $region27: #{tpu_custom_call.1} parent=11 // pred_region
        _
      $region28: #{tpu_custom_call.1} parent=11 // pred_fallthru
        _
      // Predicated region
      $region29: #{tpu_custom_call.1} parent=11 // pred_check
        %p224 = pneg %p145
      $region30: #{tpu_custom_call.1} parent=11 // pred_check_branch
        %226 = sbr.rel (%p224) target = $region32
      $region31: #{tpu_custom_call.1} parent=11 // pred_region
        _
      $region32: #{tpu_custom_call.1} parent=11 // pred_fallthru
        _
    $region12: #{tpu_custom_call.1} parent=5 // pred_fallthru
      _
    %p227 = scmp.lt.s32.totalorder %s14, 2
    // Predicated region
    $region33: #{tpu_custom_call.1} parent=5 // pred_check
      %p228 = pneg %p227
    $region34: #{tpu_custom_call.1} parent=5 // pred_check_branch
      %230 = sbr.rel (%p228) target = $region36
    $region35: #{tpu_custom_call.1} parent=5 // pred_region
      // Predicated region
      $region37: #{tpu_custom_call.1} parent=35 // pred_check
        %p231 = pneg %p34
      $region38: #{tpu_custom_call.1} parent=35 // pred_check_branch
        %233 = sbr.rel (%p231) target = $region40
      $region39: #{tpu_custom_call.1} parent=35 // pred_region
        %p234 = scmp.lt.s32.totalorder %s14, 1
        %s235 = scalar_select %p234, %s14, 1
        %s236 = smul.addr %s235, 2
        %s237 = smul.addr %s236, 4
        %s238 = scalar_lea.vmem %s0, %s237
      $region40: #{tpu_custom_call.1} parent=35 // pred_fallthru
        _
    $region36: #{tpu_custom_call.1} parent=5 // pred_fallthru
      _
    %p239 = scmp.le.s32.totalorder 1, %s14
    %p240 = scmp.lt.s32.totalorder %s14, 3
    %p241 = pnand %p239, %p240
    %p242 = pneg %p241
    // Predicated region
    $region41: #{tpu_custom_call.1} parent=5 // pred_check
      _
    $region42: #{tpu_custom_call.1} parent=5 // pred_check_branch
      %244 = sbr.rel (%p241) target = $region44
    $region43: #{tpu_custom_call.1} parent=5 // pred_region
      %s245 = ssub.s32 %s14, 1
      %p246 = scmp.lt.s32.totalorder %s19, 1
      %s247 = scalar_select %p246, %s19, 1
      %s248 = smul.addr %s247, 2
      %s249 = smul.addr %s248, 4
      %s250 = scalar_lea.vmem %s0, %s249
      %p251 = pneg %p40
      %p252 = pneg %p37
      %p253 = pneg %p61
      %p254 = pneg %p58
      %p255 = pneg %p82
      %p256 = pneg %p79
      %p257 = pneg %p103
      %p258 = pneg %p100
      %p259 = pneg %p124
      %p260 = pneg %p121
      %p261 = pneg %p145
      %p262 = pneg %p142
      %p263 = pneg %p171
      %p264 = pneg %p168
      %p265 = scmp.lt.s32.totalorder %s19, 1
      %s266 = scalar_select %p265, %s19, 1
      %s267 = smul.addr %s266, 2
      %s268 = smul.addr %s267, 4
      %s269 = scalar_lea.vmem %s6, %s268
      %p270 = pneg %p197
      %p271 = pneg %p194
      %p272 = scmp.lt.s32.totalorder %s19, 1
      %s273 = scalar_select %p272, %s19, 1
      %s274 = smul.addr %s273, 4
      %s275 = smul.addr %s274, 8
      %s276 = scalar_lea.vmem %s7, %s275
      %p277 = scmp.lt.s32.totalorder %s19, 1
      %s278 = scalar_select %p277, %s19, 1
      %s279 = smul.addr %s278, 2
      %s280 = smul.addr %s279, 4
      %s281 = scalar_lea.vmem %s0, %s280
      %p282 = scmp.lt.s32.totalorder %s19, 1
      %s283 = scalar_select %p282, %s19, 1
      %s284 = smul.addr %s283, 2
      %s285 = smul.addr %s284, 4
      %s286 = scalar_lea.vmem %s6, %s285
      %p287 = scmp.lt.s32.totalorder %s19, 1
      %s288 = scalar_select %p287, %s19, 1
      %s289 = smul.addr %s288, 4
      %s290 = smul.addr %s289, 8
      %s291 = scalar_lea.vmem %s7, %s290
      %vm293 = vcmask 254976
      %294 = vst.msk [vmem:[#allocation2] sm:$0x3] %vm293, 0
      %vm295 = vcmask 517376
      %296 = vst.msk [vmem:[#allocation2 + $0x4] sm:$0x3] %vm295, 0
      %v297 = vld [vmem:[%s281] sm:$0xff]
      %v299 = vcombine.high %v297, %v297
      %v301 = vpack.c.bf16 %v297, %v297
      %v302 = vpack.c.bf16 %v299, %v299
      %v305 = vcombine.low %v301, %v302
      %v307 = vunpack.c.l.s4 1983009808
      %v308 = vunpack.c.0.s8 %v307
      %v309 = vlaneseq
      %v310 = vshrl.u32 %v309, 7
      %v311 = vsub.s32 %v308, %v310
      %v312 = vrot.slane %v305, %v311
      %313 = vrot.lane.b32.xlu0 %v312, 32
      %v314 = vpop.permute.xlu0 %313
      %v315 = vrot.slane %v314, 6
      %vm316 = vcmask 261120
      %v317 = vsel %vm316, %v315, %v314
      %vm319 = vcmask 1041664
      %vm320 = vcmask 1043458
      %vm321 = vmor %vm320, %vm319
      %vm322 = vcmask 259076
      %vm323 = vmor %vm322, %vm321
      %324 = vst.msk [vmem:[#allocation2] sm:$0x3f] %vm323, %v317
      %v325 = vld [vmem:[%s1] ss:$2 sm:$0x3]
      %s326 = scalar_lea.vmem %s1, 1
      %v327 = vld [vmem:[%s326] ss:$2 sm:$0x3]
      %v328 = vld [vmem:[#allocation2] sm:$0x3f]
      %v329 = vld [vmem:[%s2] sm:$0x3]
      %v331 = vcombine.high %v328, %v328
      %v333 = vunpack.c.l.s4 1983009808
      %v334 = vunpack.c.0.s8 %v333
      %v335 = vlaneseq
      %v336 = vshrl.u32 %v335, 7
      %v337 = vsub.s32 %v334, %v336
      %v338 = vrot.slane %v328, %v337
      %v340 = vunpack.c.l.s4 1983009808
      %v341 = vunpack.c.0.s8 %v340
      %v342 = vlaneseq
      %v343 = vshrl.u32 %v342, 7
      %v344 = vsub.s32 %v341, %v343
      %v345 = vrot.slane %v331, %v344
      %v346 = vcombine.high %v338, %v338
      %347 = vrot.lane.b32.xlu0 %v338, 113
      %v348 = vpop.permute.xlu0 %347
      %349 = vrot.lane.b32.xlu0 %v346, 113
      %v350 = vpop.permute.xlu0 %349
      %351 = vrot.lane.b32.xlu0 %v345, 113
      %v352 = vpop.permute.xlu0 %351
      %vm353 = vcmask 924672
      %v354 = vsel %vm353, %v348, %v350
      %v355 = vsel %vm353, %v350, %v352
      %vm356 = vcmask 31744
      %v358 = vsel %vm356, %v329, 0
      %vm360 = vcmask 1041408
      %v362 = vsel %vm360, %v354, 0
      %v365 = vsel %vm360, %v355, 0
      %367 = vmatprep.subr.bf16.mxu0 0
      %368 = vmatpush1.bf16.msra.mxu0 0
      %369 = vmatprep.subr.bf16.mxu0 0
      %370 = vmatpush1.bf16.msra.mxu0 0
      %371 = vmatprep.subr.bf16.mxu0 0
      %372 = vmatpush1.bf16.msra.mxu0 0
      %373 = vmatprep.subr.bf16.mxu0 0
      %374 = vmatpush1.bf16.msra.mxu0 0
      %375 = vmatprep.subr.bf16.mxu0 0
      %376 = vmatpush1.bf16.msra.mxu0 0
      %377 = vmatprep.subr.bf16.mxu0 0
      %378 = vmatpush1.bf16.msra.mxu0 0
      %379 = vmatprep.subr.bf16.mxu0 0
      %380 = vmatpush1.bf16.msra.mxu0 0
      %381 = vmatprep.subr.bf16.mxu0 %v365
      %382 = vmatpush1.bf16.msra.mxu0 %v362
      %383 = vmatprep.subr.bf16.mxu0 0
      %384 = vmatpush2.bf16.msra.mxu0 0
      %385 = vmatprep.subr.bf16.mxu0 0
      %386 = vmatpush2.bf16.msra.mxu0 0
      %387 = vmatprep.subr.bf16.mxu0 0
      %388 = vmatpush2.bf16.msra.mxu0 0
      %389 = vmatprep.subr.bf16.mxu0 0
      %390 = vmatpush2.bf16.msra.mxu0 0
      %391 = vmatprep.subr.bf16.mxu0 0
      %392 = vmatpush2.bf16.msra.mxu0 0
      %393 = vmatprep.subr.bf16.mxu0 0
      %394 = vmatpush2.bf16.msra.mxu0 0
      %395 = vmatprep.subr.bf16.mxu0 0
      %396 = vmatpush2.bf16.msra.mxu0 0
      %397 = vmatprep.subr.bf16.mxu0 0
      %398 = vmatpush2.bf16.msra.mxu0 0
      %399 = vmatprep.mubr.bf16.mxu0 0
      %400 = vmatmul.mubr.bf16.gmra.mxu0 %v358
      %v401 = vpop.f32.mrf.mxu0
      %v402 = vadd.f32 0.0, %v401
      %v403 = vpop.f32.mrf.mxu0
      %v404 = vadd.f32 0.0, %v403
      %v405 = vpop.f32.mrf.mxu0
      %v406 = vpop.f32.mrf.mxu0
      %407 = vdwg.mxu0
      %v409 = vlaneseq
      %v410 = vshrl.u32 %v409, 7
      %v411 = vsub.s32 0, %v410
      %v412 = vrot.slane %v325, %v411
      %v413 = vlaneseq
      %v414 = vshrl.u32 %v413, 7
      %v415 = vsub.s32 1, %v414
      %v416 = vrot.slane %v325, %v415
      %v419 = vmul.f32 %v402, %v412
      %v420 = vmul.f32 %v404, %v416
      %v421 = vld [vmem:[#allocation2] sm:$0x3f]
      %s422 = scalar_lea.vmem %s2, 2
      %v423 = vld [vmem:[%s422] sm:$0x3]
      %v425 = vcombine.high %v421, %v421
      %v427 = vunpack.c.l.s4 1983009808
      %v428 = vunpack.c.0.s8 %v427
      %v429 = vlaneseq
      %v430 = vshrl.u32 %v429, 7
      %v431 = vsub.s32 %v428, %v430
      %v432 = vrot.slane %v421, %v431
      %v434 = vunpack.c.l.s4 1983009808
      %v435 = vunpack.c.0.s8 %v434
      %v436 = vlaneseq
      %v437 = vshrl.u32 %v436, 7
      %v438 = vsub.s32 %v435, %v437
      %v439 = vrot.slane %v425, %v438
      %v440 = vcombine.high %v432, %v432
      %441 = vrot.lane.b32.xlu0 %v432, 112
      %v442 = vpop.permute.xlu0 %441
      %443 = vrot.lane.b32.xlu0 %v440, 112
      %v444 = vpop.permute.xlu0 %443
      %445 = vrot.lane.b32.xlu0 %v439, 112
      %v446 = vpop.permute.xlu0 %445
      %vm447 = vcmask 916480
      %v448 = vsel %vm447, %v442, %v444
      %v449 = vsel %vm447, %v444, %v446
      %v451 = vsel %vm356, %v423, 0
      %v454 = vsel %vm360, %v448, 0
      %v457 = vsel %vm360, %v449, 0
      %459 = vmatprep.subr.bf16.mxu0 0
      %460 = vmatpush1.bf16.msra.mxu0 0
      %461 = vmatprep.subr.bf16.mxu0 0
      %462 = vmatpush1.bf16.msra.mxu0 0
      %463 = vmatprep.subr.bf16.mxu0 0
      %464 = vmatpush1.bf16.msra.mxu0 0
      %465 = vmatprep.subr.bf16.mxu0 0
      %466 = vmatpush1.bf16.msra.mxu0 0
      %467 = vmatprep.subr.bf16.mxu0 0
      %468 = vmatpush1.bf16.msra.mxu0 0
      %469 = vmatprep.subr.bf16.mxu0 0
      %470 = vmatpush1.bf16.msra.mxu0 0
      %471 = vmatprep.subr.bf16.mxu0 0
      %472 = vmatpush1.bf16.msra.mxu0 0
      %473 = vmatprep.subr.bf16.mxu0 %v457
      %474 = vmatpush1.bf16.msra.mxu0 %v454
      %475 = vmatprep.subr.bf16.mxu0 0
      %476 = vmatpush2.bf16.msra.mxu0 0
      %477 = vmatprep.subr.bf16.mxu0 0
      %478 = vmatpush2.bf16.msra.mxu0 0
      %479 = vmatprep.subr.bf16.mxu0 0
      %480 = vmatpush2.bf16.msra.mxu0 0
      %481 = vmatprep.subr.bf16.mxu0 0
      %482 = vmatpush2.bf16.msra.mxu0 0
      %483 = vmatprep.subr.bf16.mxu0 0
      %484 = vmatpush2.bf16.msra.mxu0 0
      %485 = vmatprep.subr.bf16.mxu0 0
      %486 = vmatpush2.bf16.msra.mxu0 0
      %487 = vmatprep.subr.bf16.mxu0 0
      %488 = vmatpush2.bf16.msra.mxu0 0
      %489 = vmatprep.subr.bf16.mxu0 0
      %490 = vmatpush2.bf16.msra.mxu0 0
      %491 = vmatprep.mubr.bf16.mxu0 0
      %492 = vmatmul.mubr.bf16.gmra.mxu0 %v451
      %v493 = vpop.f32.mrf.mxu0
      %v494 = vadd.f32 0.0, %v493
      %v495 = vpop.f32.mrf.mxu0
      %v496 = vadd.f32 0.0, %v495
      %v497 = vpop.f32.mrf.mxu0
      %v498 = vpop.f32.mrf.mxu0
      %499 = vdwg.mxu0
      %v500 = vadd.f32 %v419, %v494
      %v501 = vadd.f32 %v420, %v496
      %v502 = vld [vmem:[#allocation2] sm:$0x3f]
      %s503 = scalar_lea.vmem %s2, 4
      %v504 = vld [vmem:[%s503] sm:$0x3]
      %v506 = vcombine.high %v502, %v502
      %v508 = vunpack.c.l.s4 1983009808
      %v509 = vunpack.c.0.s8 %v508
      %v510 = vlaneseq
      %v511 = vshrl.u32 %v510, 7
      %v512 = vsub.s32 %v509, %v511
      %v513 = vrot.slane %v502, %v512
      %v515 = vunpack.c.l.s4 1983009808
      %v516 = vunpack.c.0.s8 %v515
      %v517 = vlaneseq
      %v518 = vshrl.u32 %v517, 7
      %v519 = vsub.s32 %v516, %v518
      %v520 = vrot.slane %v506, %v519
      %v521 = vcombine.high %v513, %v513
      %522 = vrot.lane.b32.xlu0 %v513, 111
      %v523 = vpop.permute.xlu0 %522
      %524 = vrot.lane.b32.xlu0 %v521, 111
      %v525 = vpop.permute.xlu0 %524
      %526 = vrot.lane.b32.xlu0 %v520, 111
      %v527 = vpop.permute.xlu0 %526
      %vm528 = vcmask 908288
      %v529 = vsel %vm528, %v523, %v525
      %v530 = vsel %vm528, %v525, %v527
      %v532 = vsel %vm356, %v504, 0
      %v535 = vsel %vm360, %v529, 0
      %v538 = vsel %vm360, %v530, 0
      %540 = vmatprep.subr.bf16.mxu0 0
      %541 = vmatpush1.bf16.msra.mxu0 0
      %542 = vmatprep.subr.bf16.mxu0 0
      %543 = vmatpush1.bf16.msra.mxu0 0
      %544 = vmatprep.subr.bf16.mxu0 0
      %545 = vmatpush1.bf16.msra.mxu0 0
      %546 = vmatprep.subr.bf16.mxu0 0
      %547 = vmatpush1.bf16.msra.mxu0 0
      %548 = vmatprep.subr.bf16.mxu0 0
      %549 = vmatpush1.bf16.msra.mxu0 0
      %550 = vmatprep.subr.bf16.mxu0 0
      %551 = vmatpush1.bf16.msra.mxu0 0
      %552 = vmatprep.subr.bf16.mxu0 0
      %553 = vmatpush1.bf16.msra.mxu0 0
      %554 = vmatprep.subr.bf16.mxu0 %v538
      %555 = vmatpush1.bf16.msra.mxu0 %v535
      %556 = vmatprep.subr.bf16.mxu0 0
      %557 = vmatpush2.bf16.msra.mxu0 0
      %558 = vmatprep.subr.bf16.mxu0 0
      %559 = vmatpush2.bf16.msra.mxu0 0
      %560 = vmatprep.subr.bf16.mxu0 0
      %561 = vmatpush2.bf16.msra.mxu0 0
      %562 = vmatprep.subr.bf16.mxu0 0
      %563 = vmatpush2.bf16.msra.mxu0 0
      %564 = vmatprep.subr.bf16.mxu0 0
      %565 = vmatpush2.bf16.msra.mxu0 0
      %566 = vmatprep.subr.bf16.mxu0 0
      %567 = vmatpush2.bf16.msra.mxu0 0
      %568 = vmatprep.subr.bf16.mxu0 0
      %569 = vmatpush2.bf16.msra.mxu0 0
      %570 = vmatprep.subr.bf16.mxu0 0
      %571 = vmatpush2.bf16.msra.mxu0 0
      %572 = vmatprep.mubr.bf16.mxu0 0
      %573 = vmatmul.mubr.bf16.gmra.mxu0 %v532
      %v574 = vpop.f32.mrf.mxu0
      %v575 = vadd.f32 0.0, %v574
      %v576 = vpop.f32.mrf.mxu0
      %v577 = vadd.f32 0.0, %v576
      %v578 = vpop.f32.mrf.mxu0
      %v579 = vpop.f32.mrf.mxu0
      %580 = vdwg.mxu0
      %v582 = vlaneseq
      %v583 = vshrl.u32 %v582, 7
      %v584 = vsub.s32 0, %v583
      %v585 = vrot.slane %v327, %v584
      %v586 = vlaneseq
      %v587 = vshrl.u32 %v586, 7
      %v588 = vsub.s32 1, %v587
      %v589 = vrot.slane %v327, %v588
      %v592 = vmul.f32 %v575, %v585
      %v593 = vmul.f32 %v577, %v589
      %v594 = vadd.f32 %v500, %v592
      %v595 = vadd.f32 %v501, %v593
      %v596 = vld [vmem:[#allocation2] sm:$0x3f]
      %s597 = scalar_lea.vmem %s2, 6
      %v598 = vld [vmem:[%s597] sm:$0x3]
      %v600 = vcombine.high %v596, %v596
      %v602 = vunpack.c.l.s4 1983009808
      %v603 = vunpack.c.0.s8 %v602
      %v604 = vlaneseq
      %v605 = vshrl.u32 %v604, 7
      %v606 = vsub.s32 %v603, %v605
      %v607 = vrot.slane %v596, %v606
      %v609 = vunpack.c.l.s4 1983009808
      %v610 = vunpack.c.0.s8 %v609
      %v611 = vlaneseq
      %v612 = vshrl.u32 %v611, 7
      %v613 = vsub.s32 %v610, %v612
      %v614 = vrot.slane %v600, %v613
      %v615 = vcombine.high %v607, %v607
      %616 = vrot.lane.b32.xlu0 %v607, 97
      %v617 = vpop.permute.xlu0 %616
      %618 = vrot.lane.b32.xlu0 %v615, 97
      %v619 = vpop.permute.xlu0 %618
      %620 = vrot.lane.b32.xlu0 %v614, 97
      %v621 = vpop.permute.xlu0 %620
      %vm622 = vcmask 793600
      %v623 = vsel %vm622, %v617, %v619
      %v624 = vsel %vm622, %v619, %v621
      %v626 = vsel %vm356, %v598, 0
      %v629 = vsel %vm360, %v623, 0
      %v632 = vsel %vm360, %v624, 0
      %634 = vmatprep.subr.bf16.mxu0 0
      %635 = vmatpush1.bf16.msra.mxu0 0
      %636 = vmatprep.subr.bf16.mxu0 0
      %637 = vmatpush1.bf16.msra.mxu0 0
      %638 = vmatprep.subr.bf16.mxu0 0
      %639 = vmatpush1.bf16.msra.mxu0 0
      %640 = vmatprep.subr.bf16.mxu0 0
      %641 = vmatpush1.bf16.msra.mxu0 0
      %642 = vmatprep.subr.bf16.mxu0 0
      %643 = vmatpush1.bf16.msra.mxu0 0
      %644 = vmatprep.subr.bf16.mxu0 0
      %645 = vmatpush1.bf16.msra.mxu0 0
      %646 = vmatprep.subr.bf16.mxu0 0
      %647 = vmatpush1.bf16.msra.mxu0 0
      %648 = vmatprep.subr.bf16.mxu0 %v632
      %649 = vmatpush1.bf16.msra.mxu0 %v629
      %650 = vmatprep.subr.bf16.mxu0 0
      %651 = vmatpush2.bf16.msra.mxu0 0
      %652 = vmatprep.subr.bf16.mxu0 0
      %653 = vmatpush2.bf16.msra.mxu0 0
      %654 = vmatprep.subr.bf16.mxu0 0
      %655 = vmatpush2.bf16.msra.mxu0 0
      %656 = vmatprep.subr.bf16.mxu0 0
      %657 = vmatpush2.bf16.msra.mxu0 0
      %658 = vmatprep.subr.bf16.mxu0 0
      %659 = vmatpush2.bf16.msra.mxu0 0
      %660 = vmatprep.subr.bf16.mxu0 0
      %661 = vmatpush2.bf16.msra.mxu0 0
      %662 = vmatprep.subr.bf16.mxu0 0
      %663 = vmatpush2.bf16.msra.mxu0 0
      %664 = vmatprep.subr.bf16.mxu0 0
      %665 = vmatpush2.bf16.msra.mxu0 0
      %666 = vmatprep.mubr.bf16.mxu0 0
      %667 = vmatmul.mubr.bf16.gmra.mxu0 %v626
      %v668 = vpop.f32.mrf.mxu0
      %v669 = vadd.f32 0.0, %v668
      %v670 = vpop.f32.mrf.mxu0
      %v671 = vadd.f32 0.0, %v670
      %v672 = vpop.f32.mrf.mxu0
      %v673 = vpop.f32.mrf.mxu0
      %674 = vdwg.mxu0
      %v675 = vmul.f32 %v669, %v412
      %v676 = vmul.f32 %v671, %v416
      %v677 = vadd.f32 %v594, %v675
      %v678 = vadd.f32 %v595, %v676
      %v679 = vld [vmem:[#allocation2] sm:$0x3f]
      %s680 = scalar_lea.vmem %s2, 8
      %v681 = vld [vmem:[%s680] sm:$0x3]
      %v683 = vcombine.high %v679, %v679
      %v685 = vunpack.c.l.s4 1983009808
      %v686 = vunpack.c.0.s8 %v685
      %v687 = vlaneseq
      %v688 = vshrl.u32 %v687, 7
      %v689 = vsub.s32 %v686, %v688
      %v690 = vrot.slane %v679, %v689
      %v692 = vunpack.c.l.s4 1983009808
      %v693 = vunpack.c.0.s8 %v692
      %v694 = vlaneseq
      %v695 = vshrl.u32 %v694, 7
      %v696 = vsub.s32 %v693, %v695
      %v697 = vrot.slane %v683, %v696
      %v698 = vcombine.high %v690, %v690
      %699 = vrot.lane.b32.xlu0 %v690, 96
      %v700 = vpop.permute.xlu0 %699
      %701 = vrot.lane.b32.xlu0 %v698, 96
      %v702 = vpop.permute.xlu0 %701
      %703 = vrot.lane.b32.xlu0 %v697, 96
      %v704 = vpop.permute.xlu0 %703
      %vm705 = vcmask 785408
      %v706 = vsel %vm705, %v700, %v702
      %v707 = vsel %vm705, %v702, %v704
      %v709 = vsel %vm356, %v681, 0
      %v712 = vsel %vm360, %v706, 0
      %v715 = vsel %vm360, %v707, 0
      %717 = vmatprep.subr.bf16.mxu0 0
      %718 = vmatpush1.bf16.msra.mxu0 0
      %719 = vmatprep.subr.bf16.mxu0 0
      %720 = vmatpush1.bf16.msra.mxu0 0
      %721 = vmatprep.subr.bf16.mxu0 0
      %722 = vmatpush1.bf16.msra.mxu0 0
      %723 = vmatprep.subr.bf16.mxu0 0
      %724 = vmatpush1.bf16.msra.mxu0 0
      %725 = vmatprep.subr.bf16.mxu0 0
      %726 = vmatpush1.bf16.msra.mxu0 0
      %727 = vmatprep.subr.bf16.mxu0 0
      %728 = vmatpush1.bf16.msra.mxu0 0
      %729 = vmatprep.subr.bf16.mxu0 0
      %730 = vmatpush1.bf16.msra.mxu0 0
      %731 = vmatprep.subr.bf16.mxu0 %v715
      %732 = vmatpush1.bf16.msra.mxu0 %v712
      %733 = vmatprep.subr.bf16.mxu0 0
      %734 = vmatpush2.bf16.msra.mxu0 0
      %735 = vmatprep.subr.bf16.mxu0 0
      %736 = vmatpush2.bf16.msra.mxu0 0
      %737 = vmatprep.subr.bf16.mxu0 0
      %738 = vmatpush2.bf16.msra.mxu0 0
      %739 = vmatprep.subr.bf16.mxu0 0
      %740 = vmatpush2.bf16.msra.mxu0 0
      %741 = vmatprep.subr.bf16.mxu0 0
      %742 = vmatpush2.bf16.msra.mxu0 0
      %743 = vmatprep.subr.bf16.mxu0 0
      %744 = vmatpush2.bf16.msra.mxu0 0
      %745 = vmatprep.subr.bf16.mxu0 0
      %746 = vmatpush2.bf16.msra.mxu0 0
      %747 = vmatprep.subr.bf16.mxu0 0
      %748 = vmatpush2.bf16.msra.mxu0 0
      %749 = vmatprep.mubr.bf16.mxu0 0
      %750 = vmatmul.mubr.bf16.gmra.mxu0 %v709
      %v751 = vpop.f32.mrf.mxu0
      %v752 = vadd.f32 0.0, %v751
      %v753 = vpop.f32.mrf.mxu0
      %v754 = vadd.f32 0.0, %v753
      %v755 = vpop.f32.mrf.mxu0
      %v756 = vpop.f32.mrf.mxu0
      %757 = vdwg.mxu0
      %v758 = vadd.f32 %v677, %v752
      %v759 = vadd.f32 %v678, %v754
      %v760 = vld [vmem:[#allocation2] sm:$0x3f]
      %s761 = scalar_lea.vmem %s2, 10
      %v762 = vld [vmem:[%s761] sm:$0x3]
      %v764 = vcombine.high %v760, %v760
      %v766 = vunpack.c.l.s4 1983009808
      %v767 = vunpack.c.0.s8 %v766
      %v768 = vlaneseq
      %v769 = vshrl.u32 %v768, 7
      %v770 = vsub.s32 %v767, %v769
      %v771 = vrot.slane %v760, %v770
      %v773 = vunpack.c.l.s4 1983009808
      %v774 = vunpack.c.0.s8 %v773
      %v775 = vlaneseq
      %v776 = vshrl.u32 %v775, 7
      %v777 = vsub.s32 %v774, %v776
      %v778 = vrot.slane %v764, %v777
      %v779 = vcombine.high %v771, %v771
      %780 = vrot.lane.b32.xlu0 %v771, 95
      %v781 = vpop.permute.xlu0 %780
      %782 = vrot.lane.b32.xlu0 %v779, 95
      %v783 = vpop.permute.xlu0 %782
      %784 = vrot.lane.b32.xlu0 %v778, 95
      %v785 = vpop.permute.xlu0 %784
      %vm786 = vcmask 777216
      %v787 = vsel %vm786, %v781, %v783
      %v788 = vsel %vm786, %v783, %v785
      %v790 = vsel %vm356, %v762, 0
      %v793 = vsel %vm360, %v787, 0
      %v796 = vsel %vm360, %v788, 0
      %798 = vmatprep.subr.bf16.mxu0 0
      %799 = vmatpush1.bf16.msra.mxu0 0
      %800 = vmatprep.subr.bf16.mxu0 0
      %801 = vmatpush1.bf16.msra.mxu0 0
      %802 = vmatprep.subr.bf16.mxu0 0
      %803 = vmatpush1.bf16.msra.mxu0 0
      %804 = vmatprep.subr.bf16.mxu0 0
      %805 = vmatpush1.bf16.msra.mxu0 0
      %806 = vmatprep.subr.bf16.mxu0 0
      %807 = vmatpush1.bf16.msra.mxu0 0
      %808 = vmatprep.subr.bf16.mxu0 0
      %809 = vmatpush1.bf16.msra.mxu0 0
      %810 = vmatprep.subr.bf16.mxu0 0
      %811 = vmatpush1.bf16.msra.mxu0 0
      %812 = vmatprep.subr.bf16.mxu0 %v796
      %813 = vmatpush1.bf16.msra.mxu0 %v793
      %814 = vmatprep.subr.bf16.mxu0 0
      %815 = vmatpush2.bf16.msra.mxu0 0
      %816 = vmatprep.subr.bf16.mxu0 0
      %817 = vmatpush2.bf16.msra.mxu0 0
      %818 = vmatprep.subr.bf16.mxu0 0
      %819 = vmatpush2.bf16.msra.mxu0 0
      %820 = vmatprep.subr.bf16.mxu0 0
      %821 = vmatpush2.bf16.msra.mxu0 0
      %822 = vmatprep.subr.bf16.mxu0 0
      %823 = vmatpush2.bf16.msra.mxu0 0
      %824 = vmatprep.subr.bf16.mxu0 0
      %825 = vmatpush2.bf16.msra.mxu0 0
      %826 = vmatprep.subr.bf16.mxu0 0
      %827 = vmatpush2.bf16.msra.mxu0 0
      %828 = vmatprep.subr.bf16.mxu0 0
      %829 = vmatpush2.bf16.msra.mxu0 0
      %830 = vmatprep.mubr.bf16.mxu0 0
      %831 = vmatmul.mubr.bf16.gmra.mxu0 %v790
      %v832 = vpop.f32.mrf.mxu0
      %v833 = vadd.f32 0.0, %v832
      %v834 = vpop.f32.mrf.mxu0
      %v835 = vadd.f32 0.0, %v834
      %v836 = vpop.f32.mrf.mxu0
      %v837 = vpop.f32.mrf.mxu0
      %838 = vdwg.mxu0
      %v839 = vmul.f32 %v833, %v585
      %v840 = vmul.f32 %v835, %v589
      %v841 = vadd.f32 %v758, %v839
      %v842 = vadd.f32 %v759, %v840
      %v843 = vld [vmem:[#allocation2] sm:$0x3f]
      %s844 = scalar_lea.vmem %s2, 12
      %v845 = vld [vmem:[%s844] sm:$0x3]
      %v847 = vcombine.high %v843, %v843
      %v849 = vunpack.c.l.s4 1983009808
      %v850 = vunpack.c.0.s8 %v849
      %v851 = vlaneseq
      %v852 = vshrl.u32 %v851, 7
      %v853 = vsub.s32 %v850, %v852
      %v854 = vrot.slane %v843, %v853
      %v856 = vunpack.c.l.s4 1983009808
      %v857 = vunpack.c.0.s8 %v856
      %v858 = vlaneseq
      %v859 = vshrl.u32 %v858, 7
      %v860 = vsub.s32 %v857, %v859
      %v861 = vrot.slane %v847, %v860
      %v862 = vcombine.high %v854, %v854
      %863 = vrot.lane.b32.xlu0 %v854, 81
      %v864 = vpop.permute.xlu0 %863
      %865 = vrot.lane.b32.xlu0 %v862, 81
      %v866 = vpop.permute.xlu0 %865
      %867 = vrot.lane.b32.xlu0 %v861, 81
      %v868 = vpop.permute.xlu0 %867
      %vm869 = vcmask 662528
      %v870 = vsel %vm869, %v864, %v866
      %v871 = vsel %vm869, %v866, %v868
      %v873 = vsel %vm356, %v845, 0
      %v876 = vsel %vm360, %v870, 0
      %v879 = vsel %vm360, %v871, 0
      %881 = vmatprep.subr.bf16.mxu0 0
      %882 = vmatpush1.bf16.msra.mxu0 0
      %883 = vmatprep.subr.bf16.mxu0 0
      %884 = vmatpush1.bf16.msra.mxu0 0
      %885 = vmatprep.subr.bf16.mxu0 0
      %886 = vmatpush1.bf16.msra.mxu0 0
      %887 = vmatprep.subr.bf16.mxu0 0
      %888 = vmatpush1.bf16.msra.mxu0 0
      %889 = vmatprep.subr.bf16.mxu0 0
      %890 = vmatpush1.bf16.msra.mxu0 0
      %891 = vmatprep.subr.bf16.mxu0 0
      %892 = vmatpush1.bf16.msra.mxu0 0
      %893 = vmatprep.subr.bf16.mxu0 0
      %894 = vmatpush1.bf16.msra.mxu0 0
      %895 = vmatprep.subr.bf16.mxu0 %v879
      %896 = vmatpush1.bf16.msra.mxu0 %v876
      %897 = vmatprep.subr.bf16.mxu0 0
      %898 = vmatpush2.bf16.msra.mxu0 0
      %899 = vmatprep.subr.bf16.mxu0 0
      %900 = vmatpush2.bf16.msra.mxu0 0
      %901 = vmatprep.subr.bf16.mxu0 0
      %902 = vmatpush2.bf16.msra.mxu0 0
      %903 = vmatprep.subr.bf16.mxu0 0
      %904 = vmatpush2.bf16.msra.mxu0 0
      %905 = vmatprep.subr.bf16.mxu0 0
      %906 = vmatpush2.bf16.msra.mxu0 0
      %907 = vmatprep.subr.bf16.mxu0 0
      %908 = vmatpush2.bf16.msra.mxu0 0
      %909 = vmatprep.subr.bf16.mxu0 0
      %910 = vmatpush2.bf16.msra.mxu0 0
      %911 = vmatprep.subr.bf16.mxu0 0
      %912 = vmatpush2.bf16.msra.mxu0 0
      %913 = vmatprep.mubr.bf16.mxu0 0
      %914 = vmatmul.mubr.bf16.gmra.mxu0 %v873
      %v915 = vpop.f32.mrf.mxu0
      %v916 = vadd.f32 0.0, %v915
      %v917 = vpop.f32.mrf.mxu0
      %v918 = vadd.f32 0.0, %v917
      %v919 = vpop.f32.mrf.mxu0
      %v920 = vpop.f32.mrf.mxu0
      %921 = vdwg.mxu0
      %v922 = vmul.f32 %v916, %v412
      %v923 = vmul.f32 %v918, %v416
      %v924 = vadd.f32 %v841, %v922
      %v925 = vadd.f32 %v842, %v923
      %v926 = vld [vmem:[#allocation2] sm:$0x3f]
      %s927 = scalar_lea.vmem %s2, 14
      %v928 = vld [vmem:[%s927] sm:$0x3]
      %v930 = vcombine.high %v926, %v926
      %v932 = vunpack.c.l.s4 1983009808
      %v933 = vunpack.c.0.s8 %v932
      %v934 = vlaneseq
      %v935 = vshrl.u32 %v934, 7
      %v936 = vsub.s32 %v933, %v935
      %v937 = vrot.slane %v926, %v936
      %v939 = vunpack.c.l.s4 1983009808
      %v940 = vunpack.c.0.s8 %v939
      %v941 = vlaneseq
      %v942 = vshrl.u32 %v941, 7
      %v943 = vsub.s32 %v940, %v942
      %v944 = vrot.slane %v930, %v943
      %v945 = vcombine.high %v937, %v937
      %946 = vrot.lane.b32.xlu0 %v937, 80
      %v947 = vpop.permute.xlu0 %946
      %948 = vrot.lane.b32.xlu0 %v945, 80
      %v949 = vpop.permute.xlu0 %948
      %950 = vrot.lane.b32.xlu0 %v944, 80
      %v951 = vpop.permute.xlu0 %950
      %vm952 = vcmask 654336
      %v953 = vsel %vm952, %v947, %v949
      %v954 = vsel %vm952, %v949, %v951
      %v956 = vsel %vm356, %v928, 0
      %v959 = vsel %vm360, %v953, 0
      %v962 = vsel %vm360, %v954, 0
      %964 = vmatprep.subr.bf16.mxu0 0
      %965 = vmatpush1.bf16.msra.mxu0 0
      %966 = vmatprep.subr.bf16.mxu0 0
      %967 = vmatpush1.bf16.msra.mxu0 0
      %968 = vmatprep.subr.bf16.mxu0 0
      %969 = vmatpush1.bf16.msra.mxu0 0
      %970 = vmatprep.subr.bf16.mxu0 0
      %971 = vmatpush1.bf16.msra.mxu0 0
      %972 = vmatprep.subr.bf16.mxu0 0
      %973 = vmatpush1.bf16.msra.mxu0 0
      %974 = vmatprep.subr.bf16.mxu0 0
      %975 = vmatpush1.bf16.msra.mxu0 0
      %976 = vmatprep.subr.bf16.mxu0 0
      %977 = vmatpush1.bf16.msra.mxu0 0
      %978 = vmatprep.subr.bf16.mxu0 %v962
      %979 = vmatpush1.bf16.msra.mxu0 %v959
      %980 = vmatprep.subr.bf16.mxu0 0
      %981 = vmatpush2.bf16.msra.mxu0 0
      %982 = vmatprep.subr.bf16.mxu0 0
      %983 = vmatpush2.bf16.msra.mxu0 0
      %984 = vmatprep.subr.bf16.mxu0 0
      %985 = vmatpush2.bf16.msra.mxu0 0
      %986 = vmatprep.subr.bf16.mxu0 0
      %987 = vmatpush2.bf16.msra.mxu0 0
      %988 = vmatprep.subr.bf16.mxu0 0
      %989 = vmatpush2.bf16.msra.mxu0 0
      %990 = vmatprep.subr.bf16.mxu0 0
      %991 = vmatpush2.bf16.msra.mxu0 0
      %992 = vmatprep.subr.bf16.mxu0 0
      %993 = vmatpush2.bf16.msra.mxu0 0
      %994 = vmatprep.subr.bf16.mxu0 0
      %995 = vmatpush2.bf16.msra.mxu0 0
      %996 = vmatprep.mubr.bf16.mxu0 0
      %997 = vmatmul.mubr.bf16.gmra.mxu0 %v956
      %v998 = vpop.f32.mrf.mxu0
      %v999 = vadd.f32 0.0, %v998
      %v1000 = vpop.f32.mrf.mxu0
      %v1001 = vadd.f32 0.0, %v1000
      %v1002 = vpop.f32.mrf.mxu0
      %v1003 = vpop.f32.mrf.mxu0
      %1004 = vdwg.mxu0
      %v1005 = vadd.f32 %v924, %v999
      %v1006 = vadd.f32 %v925, %v1001
      %v1007 = vld [vmem:[#allocation2] sm:$0x3f]
      %s1008 = scalar_lea.vmem %s2, 16
      %v1009 = vld [vmem:[%s1008] sm:$0x3]
      %v1011 = vcombine.high %v1007, %v1007
      %v1013 = vunpack.c.l.s4 1983009808
      %v1014 = vunpack.c.0.s8 %v1013
      %v1015 = vlaneseq
      %v1016 = vshrl.u32 %v1015, 7
      %v1017 = vsub.s32 %v1014, %v1016
      %v1018 = vrot.slane %v1007, %v1017
      %v1020 = vunpack.c.l.s4 1983009808
      %v1021 = vunpack.c.0.s8 %v1020
      %v1022 = vlaneseq
      %v1023 = vshrl.u32 %v1022, 7
      %v1024 = vsub.s32 %v1021, %v1023
      %v1025 = vrot.slane %v1011, %v1024
      %v1026 = vcombine.high %v1018, %v1018
      %1027 = vrot.lane.b32.xlu0 %v1018, 79
      %v1028 = vpop.permute.xlu0 %1027
      %1029 = vrot.lane.b32.xlu0 %v1026, 79
      %v1030 = vpop.permute.xlu0 %1029
      %1031 = vrot.lane.b32.xlu0 %v1025, 79
      %v1032 = vpop.permute.xlu0 %1031
      %vm1033 = vcmask 646144
      %v1034 = vsel %vm1033, %v1028, %v1030
      %v1035 = vsel %vm1033, %v1030, %v1032
      %v1037 = vsel %vm356, %v1009, 0
      %v1040 = vsel %vm360, %v1034, 0
      %v1043 = vsel %vm360, %v1035, 0
      %1045 = vmatprep.subr.bf16.mxu0 0
      %1046 = vmatpush1.bf16.msra.mxu0 0
      %1047 = vmatprep.subr.bf16.mxu0 0
      %1048 = vmatpush1.bf16.msra.mxu0 0
      %1049 = vmatprep.subr.bf16.mxu0 0
      %1050 = vmatpush1.bf16.msra.mxu0 0
      %1051 = vmatprep.subr.bf16.mxu0 0
      %1052 = vmatpush1.bf16.msra.mxu0 0
      %1053 = vmatprep.subr.bf16.mxu0 0
      %1054 = vmatpush1.bf16.msra.mxu0 0
      %1055 = vmatprep.subr.bf16.mxu0 0
      %1056 = vmatpush1.bf16.msra.mxu0 0
      %1057 = vmatprep.subr.bf16.mxu0 0
      %1058 = vmatpush1.bf16.msra.mxu0 0
      %1059 = vmatprep.subr.bf16.mxu0 %v1043
      %1060 = vmatpush1.bf16.msra.mxu0 %v1040
      %1061 = vmatprep.subr.bf16.mxu0 0
      %1062 = vmatpush2.bf16.msra.mxu0 0
      %1063 = vmatprep.subr.bf16.mxu0 0
      %1064 = vmatpush2.bf16.msra.mxu0 0
      %1065 = vmatprep.subr.bf16.mxu0 0
      %1066 = vmatpush2.bf16.msra.mxu0 0
      %1067 = vmatprep.subr.bf16.mxu0 0
      %1068 = vmatpush2.bf16.msra.mxu0 0
      %1069 = vmatprep.subr.bf16.mxu0 0
      %1070 = vmatpush2.bf16.msra.mxu0 0
      %1071 = vmatprep.subr.bf16.mxu0 0
      %1072 = vmatpush2.bf16.msra.mxu0 0
      %1073 = vmatprep.subr.bf16.mxu0 0
      %1074 = vmatpush2.bf16.msra.mxu0 0
      %1075 = vmatprep.subr.bf16.mxu0 0
      %1076 = vmatpush2.bf16.msra.mxu0 0
      %1077 = vmatprep.mubr.bf16.mxu0 0
      %1078 = vmatmul.mubr.bf16.gmra.mxu0 %v1037
      %v1079 = vpop.f32.mrf.mxu0
      %v1080 = vadd.f32 0.0, %v1079
      %v1081 = vpop.f32.mrf.mxu0
      %v1082 = vadd.f32 0.0, %v1081
      %v1083 = vpop.f32.mrf.mxu0
      %v1084 = vpop.f32.mrf.mxu0
      %1085 = vdwg.mxu0
      %v1086 = vmul.f32 %v1080, %v585
      %v1087 = vmul.f32 %v1082, %v589
      %v1088 = vadd.f32 %v1005, %v1086
      %v1089 = vadd.f32 %v1006, %v1087
      %v1090 = vld [vmem:[%s3] sm:$0xf]
      %1092 = vset.pattern.permute.xlu0 0
      %1093 = vperm.xlu0 %1092, %v1090
      %v1094 = vpop.permute.xlu0 %1093
      %v1096 = vadd.f32 %v1088, %v1094
      %v1097 = vadd.f32 %v1089, %v1094
      %v1098 = vmax.f32 %v1096, 0.0
      %v1099 = vmax.f32 %v1097, 0.0
      %v1100 = vld [vmem:[%s4] sm:$0xf]
      %v1101 = vld [vmem:[%s4 + $0x4] sm:$0xf]
      %v1102 = vpack.c.bf16 %v1098, %v1098
      %v1103 = vpack.c.bf16 %v1099, %v1099
      %v1104 = vld [vmem:[%s5] sm:$0xff]
      %v1105 = vld [vmem:[%s5 + $0x8] sm:$0x7f]
      %1107 = vset.pattern.permute.xlu0 0
      %1108 = vperm.xlu0 %1107, %v1104
      %v1109 = vpop.permute.xlu0 %1108
      %1112 = vset.pattern.permute.xlu0 0
      %1113 = vperm.xlu0 %1112, %v1105
      %v1114 = vpop.permute.xlu0 %1113
      %v1118 = vunpack.c.l.b16 %v1100
      %v1119 = vunpack.c.l.b16 %v1101
      %v1120 = vpack.c.b16 %v1119, %v1118
      %v1122 = vsel %vm356, %v1120, 0
      %v1125 = vsel %vm360, %v1102, 0
      %v1128 = vsel %vm360, %v1103, 0
      %1130 = vmatprep.subr.bf16.mxu0 0
      %1131 = vmatpush1.bf16.msra.mxu0 0
      %1132 = vmatprep.subr.bf16.mxu0 0
      %1133 = vmatpush1.bf16.msra.mxu0 0
      %1134 = vmatprep.subr.bf16.mxu0 0
      %1135 = vmatpush1.bf16.msra.mxu0 0
      %1136 = vmatprep.subr.bf16.mxu0 0
      %1137 = vmatpush1.bf16.msra.mxu0 0
      %1138 = vmatprep.subr.bf16.mxu0 0
      %1139 = vmatpush1.bf16.msra.mxu0 0
      %1140 = vmatprep.subr.bf16.mxu0 0
      %1141 = vmatpush1.bf16.msra.mxu0 0
      %1142 = vmatprep.subr.bf16.mxu0 0
      %1143 = vmatpush1.bf16.msra.mxu0 0
      %1144 = vmatprep.subr.bf16.mxu0 %v1128
      %1145 = vmatpush1.bf16.msra.mxu0 %v1125
      %1146 = vmatprep.subr.bf16.mxu0 0
      %1147 = vmatpush2.bf16.msra.mxu0 0
      %1148 = vmatprep.subr.bf16.mxu0 0
      %1149 = vmatpush2.bf16.msra.mxu0 0
      %1150 = vmatprep.subr.bf16.mxu0 0
      %1151 = vmatpush2.bf16.msra.mxu0 0
      %1152 = vmatprep.subr.bf16.mxu0 0
      %1153 = vmatpush2.bf16.msra.mxu0 0
      %1154 = vmatprep.subr.bf16.mxu0 0
      %1155 = vmatpush2.bf16.msra.mxu0 0
      %1156 = vmatprep.subr.bf16.mxu0 0
      %1157 = vmatpush2.bf16.msra.mxu0 0
      %1158 = vmatprep.subr.bf16.mxu0 0
      %1159 = vmatpush2.bf16.msra.mxu0 0
      %1160 = vmatprep.subr.bf16.mxu0 0
      %1161 = vmatpush2.bf16.msra.mxu0 0
      %1162 = vmatprep.mubr.bf16.mxu0 0
      %1163 = vmatmul.mubr.bf16.gmra.mxu0 %v1122
      %v1164 = vpop.f32.mrf.mxu0
      %v1165 = vadd.f32 %v1109, %v1164
      %v1166 = vpop.f32.mrf.mxu0
      %v1167 = vadd.f32 %v1109, %v1166
      %v1168 = vpop.f32.mrf.mxu0
      %v1169 = vadd.f32 %v1114, %v1168
      %v1170 = vpop.f32.mrf.mxu0
      %v1171 = vadd.f32 %v1114, %v1170
      %1172 = vdwg.mxu0
      %v1173 = vsub.f32 0.0, %v1165
      %v1174 = vsub.f32 0.0, %v1167
      %v1175 = vmul.f32 %v1173, 1.442695
      %v1176 = vpow.pop %v1175
      %v1177 = vmul.f32 %v1174, 1.442695
      %v1178 = vpow.pop %v1177
      %v1179 = vadd.f32 %v1176, 1.0
      %v1180 = vadd.f32 %v1178, 1.0
      %v1181 = vrcp.pop %v1179
      %v1182 = vmul.f32 1.0, %v1181
      %v1183 = vrcp.pop %v1180
      %v1184 = vmul.f32 1.0, %v1183
      %v1187 = vcombine.low %v1182, %v1184
      %1189 = vst [vmem:[%s286] sm:$0x77] %v1187
      %vm1194 = vcmask 1044480
      %v1195 = vrot.slane %v1165, 3
      %v1196 = vrot.slane %v1169, 3
      %v1197 = vsel %vm1194, %v1195, %v1196
      %v1198 = vrot.slane %v1167, 3
      %v1199 = vrot.slane %v1171, 3
      %v1200 = vsel %vm1194, %v1198, %v1199
      %1205 = vst [vmem:[%s291] sm:$0xff] %v1197
      %1206 = vst [vmem:[%s291 + $0x8] sm:$0xff] %v1200
      %1207 = vst [vmem:[%s291 + $0x10] sm:$0xf] %v1196
      %1208 = vst [vmem:[%s291 + $0x18] sm:$0xf] %v1199
      %p1209 = scmp.lt.s32.totalorder %s19, 1
      %s1210 = scalar_select %p1209, %s19, 1
      %s1211 = smul.addr %s1210, 2
      %s1212 = smul.addr %s1211, 4
      %s1213 = scalar_lea.vmem %s6, %s1212
      %p1214 = scmp.lt.s32.totalorder %s19, 1
      %s1215 = scalar_select %p1214, %s19, 1
      %s1216 = smul.addr %s1215, 4
      %s1217 = smul.addr %s1216, 8
      %s1218 = scalar_lea.vmem %s7, %s1217
      // Predicated region
      $region45: #{tpu_custom_call.1} parent=43 // pred_check
        %p1219 = pneg %p168
      $region46: #{tpu_custom_call.1} parent=43 // pred_check_branch
        %1221 = sbr.rel (%p1219) target = $region48
      $region47: #{tpu_custom_call.1} parent=43 // pred_region
        _
      $region48: #{tpu_custom_call.1} parent=43 // pred_fallthru
        _
      // Predicated region
      $region49: #{tpu_custom_call.1} parent=43 // pred_check
        %p1222 = pneg %p194
      $region50: #{tpu_custom_call.1} parent=43 // pred_check_branch
        %1224 = sbr.rel (%p1222) target = $region52
      $region51: #{tpu_custom_call.1} parent=43 // pred_region
        _
      $region52: #{tpu_custom_call.1} parent=43 // pred_fallthru
        _
    $region44: #{tpu_custom_call.1} parent=5 // pred_fallthru
      _
    %p1225 = scmp.le.s32.totalorder 2, %s14
    // Predicated region
    $region53: #{tpu_custom_call.1} parent=5 // pred_check
      %p1226 = pneg %p1225
    $region54: #{tpu_custom_call.1} parent=5 // pred_check_branch
      %1228 = sbr.rel (%p1226) target = $region56
    $region55: #{tpu_custom_call.1} parent=5 // pred_region
      %s1229 = ssub.s32 %s14, 2
      // Predicated region
      $region57: #{tpu_custom_call.1} parent=55 // pred_check
        %p1230 = pneg %p174
      $region58: #{tpu_custom_call.1} parent=55 // pred_check_branch
        %1232 = sbr.rel (%p1230) target = $region60
      $region59: #{tpu_custom_call.1} parent=55 // pred_region
        %p1233 = scmp.lt.s32.totalorder %s20, 1
        %s1234 = scalar_select %p1233, %s20, 1
        %s1235 = smul.addr %s1234, 2
        %s1236 = smul.addr %s1235, 4
        %s1237 = scalar_lea.vmem %s6, %s1236
      $region60: #{tpu_custom_call.1} parent=55 // pred_fallthru
        _
      // Predicated region
      $region61: #{tpu_custom_call.1} parent=55 // pred_check
        %p1238 = pneg %p200
      $region62: #{tpu_custom_call.1} parent=55 // pred_check_branch
        %1240 = sbr.rel (%p1238) target = $region64
      $region63: #{tpu_custom_call.1} parent=55 // pred_region
        %p1241 = scmp.lt.s32.totalorder %s20, 1
        %s1242 = scalar_select %p1241, %s20, 1
        %s1243 = smul.addr %s1242, 4
        %s1244 = smul.addr %s1243, 8
        %s1245 = scalar_lea.vmem %s7, %s1244
      $region64: #{tpu_custom_call.1} parent=55 // pred_fallthru
        _
    $region56: #{tpu_custom_call.1} parent=5 // pred_fallthru
      _
  $region6: #{tpu_custom_call.1} parent=0 // loop_footer
    %s18 = sadd.s32 1, %s14
  $region7: #{tpu_custom_call.1} parent=0 // loop_footer_branch
    %13 = sbr.rel target = $region3
  $region8: #{tpu_custom_call.1} parent=0 // loop_exit
    _

</llo_original>
